<compile_context>
chip_gen: v7x
topology: tpu7x:2x2x1
jax: 0.10.0
libtpu: 0.0.40
codegen_flags: <defaults>
</compile_context>

<pallas_src>
import functools

import jax
import jax.numpy as jnp
from jax import lax
from jax.experimental import pallas as pl
from jax.experimental.pallas import tpu as pltpu


# ---------------------------------------------------------------------------
# Small helpers.
# ---------------------------------------------------------------------------
def _round_up(n, m):
    return ((n + m - 1) // m) * m


def _pad_last(a, target):
    pad = target - a.shape[-1]
    if pad == 0:
        return a
    return jnp.pad(a, [(0, 0)] * (a.ndim - 1) + [(0, pad)])


# ---------------------------------------------------------------------------
# Parameter preparation (run ONCE, outside the hot loop).
# ---------------------------------------------------------------------------
def prepare_params(params, compute_dtype=jnp.bfloat16):
    """PyTorch-layout weights -> kernel layout.

    Returns:
      wx : (I, 2*Hp) bf16   [Wxz^T | Wxn^T], hidden padded to Hp = ceil128(H)
      bx : (1, 2*Hp) f32    [bxz   | bxn  ], zero-padded
      whz: (Hp, Hp) bf16    Whz^T zero-padded
      whn: (Hp, Hp) bf16    Whn^T zero-padded
      H, Hp : ints
    Padded hidden columns produce dh == 0 (z_pad = 0.5, n_pad = 0, h_pad = 0),
    so they are inert through both the single step and the Euler loop.
    """
    wxz = params["lin_xz_w"].T            # (I, H)
    wxn = params["lin_xn_w"].T            # (I, H)
    whz = params["lin_hz_w"].T            # (H, H)
    whn = params["lin_hn_w"].T            # (H, H)
    I, H = wxz.shape
    Hp = _round_up(H, 128)

    wx = jnp.concatenate([_pad_last(wxz, Hp), _pad_last(wxn, Hp)], axis=1)
    bx = jnp.concatenate([_pad_last(params["lin_xz_b"], Hp),
                          _pad_last(params["lin_xn_b"], Hp)]).reshape(1, 2 * Hp)
    whz = jnp.pad(whz, ((0, Hp - H), (0, Hp - H)))
    whn = jnp.pad(whn, ((0, Hp - H), (0, Hp - H)))

    return {
        "wx": wx.astype(compute_dtype),
        "bx": bx.astype(jnp.float32),
        "whz": whz.astype(compute_dtype),
        "whn": whn.astype(compute_dtype),
        "H": H,
        "Hp": Hp,
    }


# ---------------------------------------------------------------------------
# Kernels.
# ---------------------------------------------------------------------------
def _gru_ode_step(xz, xn, h, whz, whn):
    """One GRU-ODE step given precomputed x projections (all math f32,
    matmul operands cast to the weight dtype right at the dot)."""
    wdt = whz.dtype
    z = jax.nn.sigmoid(
        xz + jnp.dot(h.astype(wdt), whz, preferred_element_type=jnp.float32))
    zh = (z * h).astype(wdt)
    n = jnp.tanh(
        xn + jnp.dot(zh, whn, preferred_element_type=jnp.float32))
    return (1.0 - z) * (n - h)


def gru_ode_cell_kernel(x_ref, h_ref, wx_ref, bx_ref, whz_ref, whn_ref, dh_ref):
    Hp = whz_ref.shape[0]
    x = x_ref[...].astype(wx_ref.dtype)
    h = h_ref[...].astype(jnp.float32)
    # One fused x-side matmul: (TB, I) @ (I, 2*Hp); Hp % 128 == 0 so the split
    # below lands on a lane-tile boundary (no shuffle / copy).
    xproj = (jnp.dot(x, wx_ref[...], preferred_element_type=jnp.float32)
             + bx_ref[...].astype(jnp.float32))
    dh = _gru_ode_step(xproj[:, :Hp], xproj[:, Hp:], h, whz_ref[...], whn_ref[...])
    dh_ref[...] = dh.astype(dh_ref.dtype)


def gru_ode_euler_kernel(x_ref, h_ref, wx_ref, bx_ref, whz_ref, whn_ref,
                         h_out_ref, *, n_steps, dt):
    """h <- h + dt * GRUODECell(x, h), n_steps times, inside one kernel.

    Weights + the step-invariant x projection are loaded/computed once; h is
    carried in f32 registers/VMEM across the (fully unrolled) Euler loop."""
    Hp = whz_ref.shape[0]
    x = x_ref[...].astype(wx_ref.dtype)
    xproj = (jnp.dot(x, wx_ref[...], preferred_element_type=jnp.float32)
             + bx_ref[...].astype(jnp.float32))
    xz = xproj[:, :Hp]
    xn = xproj[:, Hp:]
    whz = whz_ref[...]
    whn = whn_ref[...]
    dt_f = jnp.float32(dt)

    def body(_, h):
        return h + dt_f * _gru_ode_step(xz, xn, h, whz, whn)

    # TODO(synk): optionally hold whz/whn in MXU weight regs across steps via
    # pltpu.matmul_push_rhs/acc_lhs/pop (v6e/v7x micro-opt); not done here.
    h_final = lax.fori_loop(0, n_steps, body,
                            h_ref[...].astype(jnp.float32), unroll=True)
    h_out_ref[...] = h_final.astype(h_out_ref.dtype)


# ---------------------------------------------------------------------------
# Tiling / VMEM budgeting.
# ---------------------------------------------------------------------------
_VMEM_ACT_BUDGET = 24 * 1024 * 1024   # conservative: fits v7x's 64 MiB with headroom


def _weight_bytes(I, Hp, w_bytes=2):
    # wx + whz + whn (single-buffered, bf16) + bias (f32)
    return (I * 2 * Hp + 2 * Hp * Hp) * w_bytes + 2 * Hp * 4


def _act_bytes(tb, I, Hp, act_bytes=4):
    # double-buffered x + h inputs and dh/h output tiles
    return (2 * tb * (I + Hp) + 2 * tb * Hp) * act_bytes


def _pick_batch_tile(B, I, Hp):
    sub = 8                                              # f32 sublane pack
    cands = [c for c in (1024, 512, 256, 128, 64, 32, 16, 8) if B % c == 0]
    if not cands:
        return B                                         # odd batch: single full block
    w = _weight_bytes(I, Hp)
    tb = cands[-1]
    for c in cands:                                      # biggest tile that fits VMEM
        if w + _act_bytes(c, I, Hp) <= _VMEM_ACT_BUDGET:
            tb = c
            break
    # v7x megacore: prefer >= 2 grid blocks so both TensorCores get work.
    if B // tb == 1 and tb >= 2 * sub and (tb // 2) % sub == 0:
        tb //= 2
    return tb


def _specs(tb, I, Hp):
    const = dict(pipeline_mode=pl.Buffered(1))           # weights: single-buffered
    in_specs = [
        pl.BlockSpec((tb, I), lambda i: (i, 0)),          # x  (tiled over batch)
        pl.BlockSpec((tb, Hp), lambda i: (i, 0)),         # h  (tiled over batch)
        pl.BlockSpec((I, 2 * Hp), lambda i: (0, 0), **const),   # wx
        pl.BlockSpec((1, 2 * Hp), lambda i: (0, 0), **const),   # bx
        pl.BlockSpec((Hp, Hp), lambda i: (0, 0), **const),      # whz
        pl.BlockSpec((Hp, Hp), lambda i: (0, 0), **const),      # whn
    ]
    out_spec = pl.BlockSpec((tb, Hp), lambda i: (i, 0))
    return in_specs, out_spec


def _compiler_params(tb, I, Hp):
    need = _weight_bytes(I, Hp) + _act_bytes(tb, I, Hp)
    limit = int(min(max(2 * need, 16 * 1024 * 1024), 48 * 1024 * 1024))
    return pltpu.CompilerParams(
        dimension_semantics=("parallel",),
        vmem_limit_bytes=limit,
    )


# ---------------------------------------------------------------------------
# Wrappers.
# ---------------------------------------------------------------------------
def gru_ode_cell(x, h, prepped):
    """Single GRU-ODE step.  x: (B, I), h: (B, H) -> dh: (B, H)."""
    B, I = x.shape
    H, Hp = prepped["H"], prepped["Hp"]
    h_pad = _pad_last(h, Hp)
    tb = _pick_batch_tile(B, I, Hp)
    in_specs, out_spec = _specs(tb, I, Hp)
    dh = pl.pallas_call(
        gru_ode_cell_kernel,
        out_shape=jax.ShapeDtypeStruct((B, Hp), h.dtype),
        grid=(B // tb,),
        in_specs=in_specs,
        out_specs=out_spec,
        compiler_params=_compiler_params(tb, I, Hp),
    )(x, h_pad, prepped["wx"], prepped["bx"], prepped["whz"], prepped["whn"])
    return dh[:, :H]


def gru_ode_euler(x, h0, prepped, *, n_steps, dt):
    """Fused explicit-Euler integration of the GRU-ODE cell (constant x)."""
    B, I = x.shape
    H, Hp = prepped["H"], prepped["Hp"]
    h_pad = _pad_last(h0, Hp)
    tb = _pick_batch_tile(B, I, Hp)
    in_specs, out_spec = _specs(tb, I, Hp)
    kernel = functools.partial(gru_ode_euler_kernel, n_steps=n_steps, dt=dt)
    hT = pl.pallas_call(
        kernel,
        out_shape=jax.ShapeDtypeStruct((B, Hp), h0.dtype),
        grid=(B // tb,),
        in_specs=in_specs,
        out_specs=out_spec,
        input_output_aliases={1: 0},      # h0 buffer reused for h_out
        compiler_params=_compiler_params(tb, I, Hp),
    )(x, h_pad, prepped["wx"], prepped["bx"], prepped["whz"], prepped["whn"])
    return hT[:, :H]


# ---------------------------------------------------------------------------
# Reference (pure JAX, PyTorch layout) + init.
# ---------------------------------------------------------------------------
def init_params(key, input_size, hidden_size, dtype=jnp.float32):
    """Deterministic init mimicking torch.nn.Linear default (U[-1/sqrt(fan_in)])."""
    k = jax.random.split(key, 6)
    bx = 1.0 / jnp.sqrt(input_size)
    bh = 1.0 / jnp.sqrt(hidden_size)
    return {
        "lin_xz_w": jax.random.uniform(k[0], (hidden_size, input_size), dtype, -bx, bx),
        "lin_xz_b": jax.random.uniform(k[1], (hidden_size,), dtype, -bx, bx),
        "lin_xn_w": jax.random.uniform(k[2], (hidden_size, input_size), dtype, -bx, bx),
        "lin_xn_b": jax.random.uniform(k[3], (hidden_size,), dtype, -bx, bx),
        "lin_hz_w": jax.random.uniform(k[4], (hidden_size, hidden_size), dtype, -bh, bh),
        "lin_hn_w": jax.random.uniform(k[5], (hidden_size, hidden_size), dtype, -bh, bh),
    }


def gru_ode_cell_ref(x, h, params):
    z = jax.nn.sigmoid(x @ params["lin_xz_w"].T + params["lin_xz_b"]
                       + h @ params["lin_hz_w"].T)
    n = jnp.tanh(x @ params["lin_xn_w"].T + params["lin_xn_b"]
                 + (z * h) @ params["lin_hn_w"].T)
    return (1.0 - z) * (n - h)


def gru_ode_euler_ref(x, h, params, n_steps, dt):
    for _ in range(n_steps):
        h = h + dt * gru_ode_cell_ref(x, h, params)
    return h


if __name__ == "__main__":
    key = jax.random.PRNGKey(0)
    batch = 8
    input_size = 64   # e.g. 2x the observation size for p(t) modelling
    hidden_size = 32

    kp, kx, kh = jax.random.split(key, 3)
    params = init_params(kp, input_size, hidden_size)
    prepped = prepare_params(params)            # done once, outside the hot path
    x = jax.random.normal(kx, (batch, input_size), jnp.float32)
    h = jax.random.normal(kh, (batch, hidden_size), jnp.float32)

    # Single forward step (the module's forward).  bf16 matmul operands ->
    # loosen tolerances vs the f32 reference.
    dh = gru_ode_cell(x, h, prepped)
    jax.block_until_ready(dh)
    dh_ref = gru_ode_cell_ref(x, h, params)
    assert dh.shape == (batch, hidden_size)
    assert jnp.allclose(dh, dh_ref, atol=3e-2, rtol=3e-2), "single-step mismatch"

    # Fused multi-step Euler integration (weights resident in VMEM across steps).
    n_steps, dt = 16, 0.05
    hT = gru_ode_euler(x, h, prepped, n_steps=n_steps, dt=dt)
    jax.block_until_ready(hT)
    hT_ref = gru_ode_euler_ref(x, h, params, n_steps, dt)
    assert jnp.allclose(hT, hT_ref, atol=5e-2, rtol=5e-2), "euler mismatch"

    print("KERNEL_OK")
</pallas_src>

<mosaic_0001>
module attributes {stable_mosaic.version = 11 : i64} {
  func.func @gru_ode_cell_kernel(%arg0: i32, %arg1: memref<8x64xf32, #tpu.memory_space<vmem>>, %arg2: memref<8x128xf32, #tpu.memory_space<vmem>>, %arg3: memref<64x256xbf16, #tpu.memory_space<vmem>>, %arg4: memref<1x256xf32, #tpu.memory_space<vmem>>, %arg5: memref<128x128xbf16, #tpu.memory_space<vmem>>, %arg6: memref<128x128xbf16, #tpu.memory_space<vmem>>, %arg7: memref<8x128xf32, #tpu.memory_space<vmem>>) attributes {dimension_semantics = [#tpu.dimension_semantics<parallel>], iteration_bounds = array<i64: 1>, scalar_prefetch = 0 : i64, scratch_operands = 0 : i64, tpu.core_type = #tpu.core_type<tc>, window_params = [{transform_indices = @transform_0, window_bounds = array<i64: 8, 64>}, {transform_indices = @transform_1, window_bounds = array<i64: 8, 128>}, {pipeline_mode = #tpu.pipeline_mode<synchronous>, transform_indices = @transform_2, window_bounds = array<i64: 64, 256>}, {pipeline_mode = #tpu.pipeline_mode<synchronous>, transform_indices = @transform_3, window_bounds = array<i64: 1, 256>}, {pipeline_mode = #tpu.pipeline_mode<synchronous>, transform_indices = @transform_4, window_bounds = array<i64: 128, 128>}, {pipeline_mode = #tpu.pipeline_mode<synchronous>, transform_indices = @transform_5, window_bounds = array<i64: 128, 128>}, {transform_indices = @transform_6, window_bounds = array<i64: 8, 128>}]} {
    %c0 = arith.constant 0 : index
    %c0_0 = arith.constant 0 : index
    %0 = vector.load %arg1[%c0, %c0_0] : memref<8x64xf32, #tpu.memory_space<vmem>>, vector<8x64xf32>
    %1 = arith.truncf %0 : vector<8x64xf32> to vector<8x64xbf16>
    %c0_1 = arith.constant 0 : index
    %c0_2 = arith.constant 0 : index
    %2 = vector.load %arg2[%c0_1, %c0_2] : memref<8x128xf32, #tpu.memory_space<vmem>>, vector<8x128xf32>
    %c0_3 = arith.constant 0 : index
    %c0_4 = arith.constant 0 : index
    %3 = vector.load %arg3[%c0_3, %c0_4] : memref<64x256xbf16, #tpu.memory_space<vmem>>, vector<64x256xbf16>
    %cst = arith.constant dense<0.000000e+00> : vector<8x256xf32>
    %4 = tpu.matmul %1, %3, %cst {dimension_numbers = #tpu.dot_dimension_numbers<[1], [0], [0], [1], [0, 0, 1, 1], [], []>} : vector<8x64xbf16>, vector<64x256xbf16>, vector<8x256xf32> -> vector<8x256xf32>
    %c0_5 = arith.constant 0 : index
    %c0_6 = arith.constant 0 : index
    %5 = vector.load %arg4[%c0_5, %c0_6] : memref<1x256xf32, #tpu.memory_space<vmem>>, vector<1x256xf32>
    %6 = vector.broadcast %5 : vector<1x256xf32> to vector<8x256xf32>
    %7 = arith.addf %4, %6 : vector<8x256xf32>
    %8 = vector.extract_strided_slice %7 {offsets = [0, 0], sizes = [8, 128], strides = [1, 1]} : vector<8x256xf32> to vector<8x128xf32>
    %9 = vector.extract_strided_slice %7 {offsets = [0, 128], sizes = [8, 128], strides = [1, 1]} : vector<8x256xf32> to vector<8x128xf32>
    %c0_7 = arith.constant 0 : index
    %c0_8 = arith.constant 0 : index
    %10 = vector.load %arg5[%c0_7, %c0_8] : memref<128x128xbf16, #tpu.memory_space<vmem>>, vector<128x128xbf16>
    %c0_9 = arith.constant 0 : index
    %c0_10 = arith.constant 0 : index
    %11 = vector.load %arg6[%c0_9, %c0_10] : memref<128x128xbf16, #tpu.memory_space<vmem>>, vector<128x128xbf16>
    %12 = arith.truncf %2 : vector<8x128xf32> to vector<8x128xbf16>
    %cst_11 = arith.constant dense<0.000000e+00> : vector<8x128xf32>
    %13 = tpu.matmul %12, %10, %cst_11 {dimension_numbers = #tpu.dot_dimension_numbers<[1], [0], [0], [1], [0, 0, 1, 1], [], []>} : vector<8x128xbf16>, vector<128x128xbf16>, vector<8x128xf32> -> vector<8x128xf32>
    %14 = arith.addf %8, %13 : vector<8x128xf32>
    %15 = arith.negf %14 : vector<8x128xf32>
    %16 = math.exp %15 : vector<8x128xf32>
    %cst_12 = arith.constant 1.000000e+00 : f32
    %17 = vector.broadcast %cst_12 : f32 to vector<8x128xf32>
    %18 = arith.addf %17, %16 : vector<8x128xf32>
    %19 = arith.divf %17, %18 : vector<8x128xf32>
    %20 = arith.mulf %19, %2 : vector<8x128xf32>
    %21 = arith.truncf %20 : vector<8x128xf32> to vector<8x128xbf16>
    %cst_13 = arith.constant dense<0.000000e+00> : vector<8x128xf32>
    %22 = tpu.matmul %21, %11, %cst_13 {dimension_numbers = #tpu.dot_dimension_numbers<[1], [0], [0], [1], [0, 0, 1, 1], [], []>} : vector<8x128xbf16>, vector<128x128xbf16>, vector<8x128xf32> -> vector<8x128xf32>
    %23 = arith.addf %9, %22 : vector<8x128xf32>
    %24 = math.tanh %23 : vector<8x128xf32>
    %cst_14 = arith.constant 1.000000e+00 : f32
    %25 = vector.broadcast %cst_14 : f32 to vector<8x128xf32>
    %26 = arith.subf %25, %19 : vector<8x128xf32>
    %27 = arith.subf %24, %2 : vector<8x128xf32>
    %28 = arith.mulf %26, %27 : vector<8x128xf32>
    %c0_15 = arith.constant 0 : index
    %c0_16 = arith.constant 0 : index
    %29 = vector.load %arg7[%c0_15, %c0_16] : memref<8x128xf32, #tpu.memory_space<vmem>>, vector<8x128xf32>
    tpu.vector_store %arg7[%c0_15, %c0_16], %28 {strides = array<i32>} : memref<8x128xf32, #tpu.memory_space<vmem>>, vector<8x128xf32>,
    return
  }
  func.func @transform_0(%arg0: i32) -> (i32, i32) {
    %c0_i32 = arith.constant 0 : i32
    %c0_i32_0 = arith.constant 0 : i32
    return %arg0, %c0_i32 : i32, i32
  }
  func.func @transform_1(%arg0: i32) -> (i32, i32) {
    %c0_i32 = arith.constant 0 : i32
    %c0_i32_0 = arith.constant 0 : i32
    return %arg0, %c0_i32 : i32, i32
  }
  func.func @transform_2(%arg0: i32) -> (i32, i32) {
    %c0_i32 = arith.constant 0 : i32
    %c0_i32_0 = arith.constant 0 : i32
    %c0_i32_1 = arith.constant 0 : i32
    return %c0_i32, %c0_i32_0 : i32, i32
  }
  func.func @transform_3(%arg0: i32) -> (i32, i32) {
    %c0_i32 = arith.constant 0 : i32
    %c0_i32_0 = arith.constant 0 : i32
    %c0_i32_1 = arith.constant 0 : i32
    return %c0_i32, %c0_i32_0 : i32, i32
  }
  func.func @transform_4(%arg0: i32) -> (i32, i32) {
    %c0_i32 = arith.constant 0 : i32
    %c0_i32_0 = arith.constant 0 : i32
    %c0_i32_1 = arith.constant 0 : i32
    return %c0_i32, %c0_i32_0 : i32, i32
  }
  func.func @transform_5(%arg0: i32) -> (i32, i32) {
    %c0_i32 = arith.constant 0 : i32
    %c0_i32_0 = arith.constant 0 : i32
    %c0_i32_1 = arith.constant 0 : i32
    return %c0_i32, %c0_i32_0 : i32, i32
  }
  func.func @transform_6(%arg0: i32) -> (i32, i32) {
    %c0_i32 = arith.constant 0 : i32
    %c0_i32_0 = arith.constant 0 : i32
    return %arg0, %c0_i32 : i32, i32
  }
}

</mosaic_0001>

<llo_original>
// kernel: tpu_custom_call.1
$region0: #{tpu_custom_call.1}
  #allocation0 [shape = 'u32[]', space=smem, size = 0x4, offset = 0x4, fixed_abs, tag = 'smem constant byte address 0x4 - core index']
  #allocation1 [shape = 'u32[144,128]{1,0:T(1,128)}', space=vmem, size = 0x12000, scoped, tag = 'internal scratch']
  %s0 = inlined_call_operand.hbm [shape: f32[8,64], index: 0, kind: input, shape index: {}]
  %s1 = inlined_call_operand.hbm [shape: f32[8,128], index: 1, kind: input, shape index: {}]
  %s2 = inlined_call_operand.hbm [shape: bf16[64,256], index: 2, kind: input, shape index: {}]
  %s3 = inlined_call_operand.vmem [shape: f32[1,256], index: 3, kind: input, shape index: {}]
  %s4 = inlined_call_operand.hbm [shape: bf16[128,128], index: 4, kind: input, shape index: {}]
  %s5 = inlined_call_operand.hbm [shape: bf16[128,128], index: 5, kind: input, shape index: {}]
  %s6 = inlined_call_operand.hbm [shape: f32[8,128], index: 6, kind: output, shape index: {}]
  %s7 = sld [smem:[#allocation0]]
  $region54: #{tpu_custom_call.1} parent=0
    _
  %s9 = ssub.s32 1, %s7
  %s10 = scalar_select 0, %s9, %s7
  $region1: #{tpu_custom_call.1} parent=0
    #allocation2 [shape = 'u8[4096]{0}', space=vmem, size = 0x1000, scoped, tag = 'input window, operand 0, single buffered']
    #allocation3 [shape = 's32[1]{0}', space=sflag, size = 0x4, scoped, tag = 'scoped memory for tpu_custom_call.1']
    #allocation4 [shape = 's32[1]{0}', space=sflag, size = 0x4, scoped, tag = 'scoped memory for tpu_custom_call.1']
    #allocation5 [shape = 'u8[4096]{0}', space=vmem, size = 0x1000, scoped, tag = 'input window, operand 1, single buffered']
    #allocation6 [shape = 's32[1]{0}', space=sflag, size = 0x4, scoped, tag = 'scoped memory for tpu_custom_call.1']
    #allocation7 [shape = 'u8[32768]{0}', space=vmem, size = 0x8000, scoped, tag = 'input window, operand 2, single buffered']
    #allocation8 [shape = 'u8[32768]{0}', space=vmem, size = 0x8000, scoped, tag = 'input window, operand 4, single buffered']
    #allocation9 [shape = 's32[1]{0}', space=sflag, size = 0x4, scoped, tag = 'scoped memory for tpu_custom_call.1']
    #allocation10 [shape = 'u8[32768]{0}', space=vmem, size = 0x8000, scoped, tag = 'input window, operand 5, single buffered']
    #allocation11 [shape = 'u8[4096]{0}', space=vmem, size = 0x1000, scoped, tag = 'output window, operand 0, single buffered']
    %11 = vsyncpa [#allocation3], 0
    %12 = vsyncpa [#allocation6], 0
    %13 = vsyncpa [#allocation9], 0
    %14 = vsyncpa [#allocation4], 0
    // Predicated region
    $region2: #{tpu_custom_call.1} parent=1 // pred_check
      _
    $region3: #{tpu_custom_call.1} parent=1 // pred_check_branch
      %16 = sbr.rel (0) target = $region5
    $region4: #{tpu_custom_call.1} parent=1 // pred_region
      %s18 = ssub.s32 128, 128
      %19 = vsyncadd [#allocation3], %s18
      %s21 = sshll.u32 [#allocation2], 4
      %s22 = int_to_ptr.vmem [resolvable:$true] %s21
      %24 = dma.hbm_to_vmem [thread:$0]  %s0, 128, %s22, [#allocation3]
    $region5: #{tpu_custom_call.1} parent=1 // pred_fallthru
      _
    // Predicated region
    $region6: #{tpu_custom_call.1} parent=1 // pred_check
      _
    $region7: #{tpu_custom_call.1} parent=1 // pred_check_branch
      %26 = sbr.rel (0) target = $region9
    $region8: #{tpu_custom_call.1} parent=1 // pred_region
      %s28 = ssub.s32 128, 128
      %29 = vsyncadd [#allocation6], %s28
      %s31 = sshll.u32 [#allocation5], 4
      %s32 = int_to_ptr.vmem [resolvable:$true] %s31
      %34 = dma.hbm_to_vmem [thread:$0]  %s1, 128, %s32, [#allocation6]
    $region9: #{tpu_custom_call.1} parent=1 // pred_fallthru
      _
    // Predicated region
    $region10: #{tpu_custom_call.1} parent=1 // pred_check
      _
    $region11: #{tpu_custom_call.1} parent=1 // pred_check_branch
      %36 = sbr.rel (0) target = $region13
    $region12: #{tpu_custom_call.1} parent=1 // pred_region
      %s38 = ssub.s32 1024, 1024
      %39 = vsyncadd [#allocation6], %s38
      %s40 = sshll.u32 [#allocation7], 4
      %s41 = int_to_ptr.vmem [resolvable:$true] %s40
      %46 = dma.hbm_to_vmem [thread:$0]  %s2, 1024, %s41, [#allocation6], 128, 128, 8
    $region13: #{tpu_custom_call.1} parent=1 // pred_fallthru
      _
    // Predicated region
    $region14: #{tpu_custom_call.1} parent=1 // pred_check
      _
    $region15: #{tpu_custom_call.1} parent=1 // pred_check_branch
      %48 = sbr.rel (0) target = $region17
    $region16: #{tpu_custom_call.1} parent=1 // pred_region
      _
    $region17: #{tpu_custom_call.1} parent=1 // pred_fallthru
      _
    // Predicated region
    $region18: #{tpu_custom_call.1} parent=1 // pred_check
      _
    $region19: #{tpu_custom_call.1} parent=1 // pred_check_branch
      %50 = sbr.rel (0) target = $region21
    $region20: #{tpu_custom_call.1} parent=1 // pred_region
      %s52 = ssub.s32 1024, 1024
      %53 = vsyncadd [#allocation9], %s52
      %s54 = sshll.u32 [#allocation8], 4
      %s55 = int_to_ptr.vmem [resolvable:$true] %s54
      %60 = dma.hbm_to_vmem [thread:$0]  %s4, 1024, %s55, [#allocation9], 64, 64, 4
    $region21: #{tpu_custom_call.1} parent=1 // pred_fallthru
      _
    // Predicated region
    $region22: #{tpu_custom_call.1} parent=1 // pred_check
      _
    $region23: #{tpu_custom_call.1} parent=1 // pred_check_branch
      %62 = sbr.rel (0) target = $region25
    $region24: #{tpu_custom_call.1} parent=1 // pred_region
      %s64 = ssub.s32 1024, 1024
      %65 = vsyncadd [#allocation9], %s64
      %s66 = sshll.u32 [#allocation10], 4
      %s67 = int_to_ptr.vmem [resolvable:$true] %s66
      %72 = dma.hbm_to_vmem [thread:$0]  %s5, 1024, %s67, [#allocation9], 64, 64, 4
    $region25: #{tpu_custom_call.1} parent=1 // pred_fallthru
      _
    // Predicated region
    $region26: #{tpu_custom_call.1} parent=1 // pred_check
      _
    $region27: #{tpu_custom_call.1} parent=1 // pred_check_branch
      %74 = sbr.rel (0) target = $region29
    $region28: #{tpu_custom_call.1} parent=1 // pred_region
      %75 = dma.done [#allocation3], 128
    $region29: #{tpu_custom_call.1} parent=1 // pred_fallthru
      _
    // Predicated region
    $region30: #{tpu_custom_call.1} parent=1 // pred_check
      _
    $region31: #{tpu_custom_call.1} parent=1 // pred_check_branch
      %77 = sbr.rel (0) target = $region33
    $region32: #{tpu_custom_call.1} parent=1 // pred_region
      %78 = dma.done [#allocation6], 128
    $region33: #{tpu_custom_call.1} parent=1 // pred_fallthru
      _
    // Predicated region
    $region34: #{tpu_custom_call.1} parent=1 // pred_check
      _
    $region35: #{tpu_custom_call.1} parent=1 // pred_check_branch
      %80 = sbr.rel (0) target = $region37
    $region36: #{tpu_custom_call.1} parent=1 // pred_region
      %81 = dma.done [#allocation6], 1024
    $region37: #{tpu_custom_call.1} parent=1 // pred_fallthru
      _
    // Predicated region
    $region38: #{tpu_custom_call.1} parent=1 // pred_check
      _
    $region39: #{tpu_custom_call.1} parent=1 // pred_check_branch
      %83 = sbr.rel (0) target = $region41
    $region40: #{tpu_custom_call.1} parent=1 // pred_region
      %84 = dma.done [#allocation9], 1024
    $region41: #{tpu_custom_call.1} parent=1 // pred_fallthru
      _
    // Predicated region
    $region42: #{tpu_custom_call.1} parent=1 // pred_check
      _
    $region43: #{tpu_custom_call.1} parent=1 // pred_check_branch
      %86 = sbr.rel (0) target = $region45
    $region44: #{tpu_custom_call.1} parent=1 // pred_region
      %87 = dma.done [#allocation9], 1024
    $region45: #{tpu_custom_call.1} parent=1 // pred_fallthru
      _
    %v89 = vld [vmem:[#allocation2] sm:$0xff]
    %v90 = vpack.c.bf16 %v89, %v89
    %v91 = vld [vmem:[#allocation5] sm:$0xff]
    %v92 = vld [vmem:[#allocation7] sm:$0xff]
    %v93 = vld [vmem:[#allocation7 + $0x8] sm:$0xff]
    %v94 = vld [vmem:[#allocation7 + $0x10] sm:$0xff]
    %v95 = vld [vmem:[#allocation7 + $0x18] sm:$0xff]
    %v96 = vld [vmem:[#allocation7 + $0x20] sm:$0xff]
    %v97 = vld [vmem:[#allocation7 + $0x28] sm:$0xff]
    %v98 = vld [vmem:[#allocation7 + $0x30] sm:$0xff]
    %v99 = vld [vmem:[#allocation7 + $0x38] sm:$0xff]
    %v100 = vld [vmem:[%s3] sm:$0x3]
    %v102 = vlaneseq
    %v103 = vshrl.u32 %v102, 7
    %v104 = vsub.s32 0, %v103
    %v105 = vrot.slane %v100, %v104
    %v106 = vlaneseq
    %v107 = vshrl.u32 %v106, 7
    %v108 = vsub.s32 1, %v107
    %v109 = vrot.slane %v100, %v108
    %v120 = vunpack.c.l.b16 %v92
    %v121 = vunpack.c.h.b16 %v92
    %v122 = vunpack.c.l.b16 %v93
    %v123 = vunpack.c.h.b16 %v93
    %v124 = vunpack.c.l.b16 %v94
    %v125 = vunpack.c.h.b16 %v94
    %v126 = vunpack.c.l.b16 %v95
    %v127 = vunpack.c.h.b16 %v95
    %v128 = vunpack.c.l.b16 %v96
    %v129 = vunpack.c.h.b16 %v96
    %v130 = vunpack.c.l.b16 %v97
    %v131 = vunpack.c.h.b16 %v97
    %v132 = vunpack.c.l.b16 %v98
    %v133 = vunpack.c.h.b16 %v98
    %v134 = vunpack.c.l.b16 %v99
    %v135 = vunpack.c.h.b16 %v99
    %v136 = vpack.c.b16 %v122, %v120
    %v137 = vpack.c.b16 %v123, %v121
    %v138 = vpack.c.b16 %v126, %v124
    %v139 = vpack.c.b16 %v127, %v125
    %v140 = vpack.c.b16 %v130, %v128
    %v141 = vpack.c.b16 %v131, %v129
    %v142 = vpack.c.b16 %v134, %v132
    %v143 = vpack.c.b16 %v135, %v133
    %vm152 = vcmask 523264
    %v154 = vsel %vm152, %v90, 0
    %156 = vmatprep.subr.bf16.mxu0 %v137
    %157 = vmatpush1.bf16.msra.mxu0 %v136
    %158 = vmatprep.subr.bf16.mxu0 %v139
    %159 = vmatpush1.bf16.msra.mxu0 %v138
    %160 = vmatprep.subr.bf16.mxu0 %v141
    %161 = vmatpush1.bf16.msra.mxu0 %v140
    %162 = vmatprep.subr.bf16.mxu0 %v143
    %163 = vmatpush1.bf16.msra.mxu0 %v142
    %164 = vmatprep.subr.bf16.mxu0 0
    %165 = vmatpush1.bf16.msra.mxu0 0
    %166 = vmatprep.subr.bf16.mxu0 0
    %167 = vmatpush1.bf16.msra.mxu0 0
    %168 = vmatprep.subr.bf16.mxu0 0
    %169 = vmatpush1.bf16.msra.mxu0 0
    %170 = vmatprep.subr.bf16.mxu0 0
    %171 = vmatpush1.bf16.msra.mxu0 0
    %172 = vmatprep.subr.bf16.mxu0 0
    %173 = vmatpush1.bf16.msra.mxu0 0
    %174 = vmatprep.subr.bf16.mxu0 0
    %175 = vmatpush1.bf16.msra.mxu0 0
    %176 = vmatprep.subr.bf16.mxu0 0
    %177 = vmatpush1.bf16.msra.mxu0 0
    %178 = vmatprep.subr.bf16.mxu0 0
    %179 = vmatpush1.bf16.msra.mxu0 0
    %180 = vmatprep.subr.bf16.mxu0 0
    %181 = vmatpush1.bf16.msra.mxu0 0
    %182 = vmatprep.subr.bf16.mxu0 0
    %183 = vmatpush1.bf16.msra.mxu0 0
    %184 = vmatprep.subr.bf16.mxu0 0
    %185 = vmatpush1.bf16.msra.mxu0 0
    %186 = vmatprep.subr.bf16.mxu0 0
    %187 = vmatpush1.bf16.msra.mxu0 0
    %188 = vmatprep.mubr.bf16.mxu0 0
    %189 = vmatmul.mubr.bf16.gmra.mrb[0].mxu0 %v154
    %v190 = vpop.f32.mrb[0].mxu0
    %v191 = vadd.f32 %v105, %v190
    %v192 = vpop.f32.mrb[0].mxu0
    %v193 = vadd.f32 %v109, %v192
    %v194 = vpop.f32.mrb[0].mxu0
    %v195 = vpop.f32.mrb[0].mxu0
    %196 = vdwg.mxu0
    %v197 = vld [vmem:[#allocation8] sm:$0xf]
    %v198 = vld [vmem:[#allocation8 + $0x4] sm:$0xf]
    %v199 = vld [vmem:[#allocation8 + $0x8] sm:$0xf]
    %v200 = vld [vmem:[#allocation8 + $0xc] sm:$0xf]
    %v201 = vld [vmem:[#allocation8 + $0x10] sm:$0xf]
    %v202 = vld [vmem:[#allocation8 + $0x14] sm:$0xf]
    %v203 = vld [vmem:[#allocation8 + $0x18] sm:$0xf]
    %v204 = vld [vmem:[#allocation8 + $0x1c] sm:$0xf]
    %v205 = vld [vmem:[#allocation8 + $0x20] sm:$0xf]
    %v206 = vld [vmem:[#allocation8 + $0x24] sm:$0xf]
    %v207 = vld [vmem:[#allocation8 + $0x28] sm:$0xf]
    %v208 = vld [vmem:[#allocation8 + $0x2c] sm:$0xf]
    %v209 = vld [vmem:[#allocation8 + $0x30] sm:$0xf]
    %v210 = vld [vmem:[#allocation8 + $0x34] sm:$0xf]
    %v211 = vld [vmem:[#allocation8 + $0x38] sm:$0xf]
    %v212 = vld [vmem:[#allocation8 + $0x3c] sm:$0xf]
    %v213 = vld [vmem:[#allocation10] sm:$0xf]
    %v214 = vld [vmem:[#allocation10 + $0x4] sm:$0xf]
    %v215 = vld [vmem:[#allocation10 + $0x8] sm:$0xf]
    %v216 = vld [vmem:[#allocation10 + $0xc] sm:$0xf]
    %v217 = vld [vmem:[#allocation10 + $0x10] sm:$0xf]
    %v218 = vld [vmem:[#allocation10 + $0x14] sm:$0xf]
    %v219 = vld [vmem:[#allocation10 + $0x18] sm:$0xf]
    %v220 = vld [vmem:[#allocation10 + $0x1c] sm:$0xf]
    %v221 = vld [vmem:[#allocation10 + $0x20] sm:$0xf]
    %v222 = vld [vmem:[#allocation10 + $0x24] sm:$0xf]
    %v223 = vld [vmem:[#allocation10 + $0x28] sm:$0xf]
    %v224 = vld [vmem:[#allocation10 + $0x2c] sm:$0xf]
    %v225 = vld [vmem:[#allocation10 + $0x30] sm:$0xf]
    %v226 = vld [vmem:[#allocation10 + $0x34] sm:$0xf]
    %v227 = vld [vmem:[#allocation10 + $0x38] sm:$0xf]
    %v228 = vld [vmem:[#allocation10 + $0x3c] sm:$0xf]
    %v229 = vpack.c.bf16 %v91, %v91
    %v246 = vunpack.c.l.b16 %v197
    %v247 = vunpack.c.l.b16 %v198
    %v248 = vunpack.c.l.b16 %v199
    %v249 = vunpack.c.l.b16 %v200
    %v250 = vunpack.c.l.b16 %v201
    %v251 = vunpack.c.l.b16 %v202
    %v252 = vunpack.c.l.b16 %v203
    %v253 = vunpack.c.l.b16 %v204
    %v254 = vunpack.c.l.b16 %v205
    %v255 = vunpack.c.l.b16 %v206
    %v256 = vunpack.c.l.b16 %v207
    %v257 = vunpack.c.l.b16 %v208
    %v258 = vunpack.c.l.b16 %v209
    %v259 = vunpack.c.l.b16 %v210
    %v260 = vunpack.c.l.b16 %v211
    %v261 = vunpack.c.l.b16 %v212
    %v262 = vpack.c.b16 %v247, %v246
    %v263 = vpack.c.b16 %v249, %v248
    %v264 = vpack.c.b16 %v251, %v250
    %v265 = vpack.c.b16 %v253, %v252
    %v266 = vpack.c.b16 %v255, %v254
    %v267 = vpack.c.b16 %v257, %v256
    %v268 = vpack.c.b16 %v259, %v258
    %v269 = vpack.c.b16 %v261, %v260
    %278 = vmatprep.subr.bf16.mxu0 0
    %279 = vmatpush1.bf16.msra.mxu0 %v262
    %280 = vmatprep.subr.bf16.mxu0 0
    %281 = vmatpush1.bf16.msra.mxu0 %v263
    %282 = vmatprep.subr.bf16.mxu0 0
    %283 = vmatpush1.bf16.msra.mxu0 %v264
    %284 = vmatprep.subr.bf16.mxu0 0
    %285 = vmatpush1.bf16.msra.mxu0 %v265
    %286 = vmatprep.subr.bf16.mxu0 0
    %287 = vmatpush1.bf16.msra.mxu0 %v266
    %288 = vmatprep.subr.bf16.mxu0 0
    %289 = vmatpush1.bf16.msra.mxu0 %v267
    %290 = vmatprep.subr.bf16.mxu0 0
    %291 = vmatpush1.bf16.msra.mxu0 %v268
    %292 = vmatprep.subr.bf16.mxu0 0
    %293 = vmatpush1.bf16.msra.mxu0 %v269
    %294 = vmatprep.subr.bf16.mxu0 0
    %295 = vmatpush1.bf16.msra.mxu0 0
    %296 = vmatprep.subr.bf16.mxu0 0
    %297 = vmatpush1.bf16.msra.mxu0 0
    %298 = vmatprep.subr.bf16.mxu0 0
    %299 = vmatpush1.bf16.msra.mxu0 0
    %300 = vmatprep.subr.bf16.mxu0 0
    %301 = vmatpush1.bf16.msra.mxu0 0
    %302 = vmatprep.subr.bf16.mxu0 0
    %303 = vmatpush1.bf16.msra.mxu0 0
    %304 = vmatprep.subr.bf16.mxu0 0
    %305 = vmatpush1.bf16.msra.mxu0 0
    %306 = vmatprep.subr.bf16.mxu0 0
    %307 = vmatpush1.bf16.msra.mxu0 0
    %308 = vmatprep.subr.bf16.mxu0 0
    %309 = vmatpush1.bf16.msra.mxu0 0
    %310 = vmatprep.mubr.bf16.mxu0 0
    %311 = vmatmul.mubr.bf16.gmra.mrb[0].mxu0 %v229
    %v312 = vpop.f32.mrb[0].mxu0
    %v313 = vadd.f32 0.0, %v312
    %v314 = vpop.f32.mrb[0].mxu0
    %v315 = vpop.f32.mrb[0].mxu0
    %v316 = vpop.f32.mrb[0].mxu0
    %317 = vdwg.mxu0
    %v318 = vadd.f32 %v191, %v313
    %v319 = vxor.u32 %v318, 2147483648
    %v320 = vmul.f32 %v319, 1.442695
    %v321 = vpow.pop %v320
    %v322 = vadd.f32 %v321, 1.0
    %v323 = vrcp.pop %v322
    %v324 = vmul.f32 1.0, %v323
    %v325 = vmul.f32 %v324, %v91
    %v326 = vpack.c.bf16 %v325, %v325
    %v343 = vunpack.c.l.b16 %v213
    %v344 = vunpack.c.l.b16 %v214
    %v345 = vunpack.c.l.b16 %v215
    %v346 = vunpack.c.l.b16 %v216
    %v347 = vunpack.c.l.b16 %v217
    %v348 = vunpack.c.l.b16 %v218
    %v349 = vunpack.c.l.b16 %v219
    %v350 = vunpack.c.l.b16 %v220
    %v351 = vunpack.c.l.b16 %v221
    %v352 = vunpack.c.l.b16 %v222
    %v353 = vunpack.c.l.b16 %v223
    %v354 = vunpack.c.l.b16 %v224
    %v355 = vunpack.c.l.b16 %v225
    %v356 = vunpack.c.l.b16 %v226
    %v357 = vunpack.c.l.b16 %v227
    %v358 = vunpack.c.l.b16 %v228
    %v359 = vpack.c.b16 %v344, %v343
    %v360 = vpack.c.b16 %v346, %v345
    %v361 = vpack.c.b16 %v348, %v347
    %v362 = vpack.c.b16 %v350, %v349
    %v363 = vpack.c.b16 %v352, %v351
    %v364 = vpack.c.b16 %v354, %v353
    %v365 = vpack.c.b16 %v356, %v355
    %v366 = vpack.c.b16 %v358, %v357
    %375 = vmatprep.subr.bf16.mxu0 0
    %376 = vmatpush1.bf16.msra.mxu0 %v359
    %377 = vmatprep.subr.bf16.mxu0 0
    %378 = vmatpush1.bf16.msra.mxu0 %v360
    %379 = vmatprep.subr.bf16.mxu0 0
    %380 = vmatpush1.bf16.msra.mxu0 %v361
    %381 = vmatprep.subr.bf16.mxu0 0
    %382 = vmatpush1.bf16.msra.mxu0 %v362
    %383 = vmatprep.subr.bf16.mxu0 0
    %384 = vmatpush1.bf16.msra.mxu0 %v363
    %385 = vmatprep.subr.bf16.mxu0 0
    %386 = vmatpush1.bf16.msra.mxu0 %v364
    %387 = vmatprep.subr.bf16.mxu0 0
    %388 = vmatpush1.bf16.msra.mxu0 %v365
    %389 = vmatprep.subr.bf16.mxu0 0
    %390 = vmatpush1.bf16.msra.mxu0 %v366
    %391 = vmatprep.subr.bf16.mxu0 0
    %392 = vmatpush1.bf16.msra.mxu0 0
    %393 = vmatprep.subr.bf16.mxu0 0
    %394 = vmatpush1.bf16.msra.mxu0 0
    %395 = vmatprep.subr.bf16.mxu0 0
    %396 = vmatpush1.bf16.msra.mxu0 0
    %397 = vmatprep.subr.bf16.mxu0 0
    %398 = vmatpush1.bf16.msra.mxu0 0
    %399 = vmatprep.subr.bf16.mxu0 0
    %400 = vmatpush1.bf16.msra.mxu0 0
    %401 = vmatprep.subr.bf16.mxu0 0
    %402 = vmatpush1.bf16.msra.mxu0 0
    %403 = vmatprep.subr.bf16.mxu0 0
    %404 = vmatpush1.bf16.msra.mxu0 0
    %405 = vmatprep.subr.bf16.mxu0 0
    %406 = vmatpush1.bf16.msra.mxu0 0
    %407 = vmatprep.mubr.bf16.mxu0 0
    %408 = vmatmul.mubr.bf16.gmra.mrb[0].mxu0 %v326
    %v409 = vpop.f32.mrb[0].mxu0
    %v410 = vadd.f32 0.0, %v409
    %v411 = vpop.f32.mrb[0].mxu0
    %v412 = vpop.f32.mrb[0].mxu0
    %v413 = vpop.f32.mrb[0].mxu0
    %414 = vdwg.mxu0
    %v415 = vadd.f32 %v193, %v410
    %v416 = vtanh.pop %v415
    %v417 = vsub.f32 1.0, %v324
    %v418 = vsub.f32 %v416, %v91
    %v419 = vmul.f32 %v417, %v418
    %420 = vst [vmem:[#allocation11] sm:$0xff] %v419
    // Predicated region
    $region46: #{tpu_custom_call.1} parent=1 // pred_check
      _
    $region47: #{tpu_custom_call.1} parent=1 // pred_check_branch
      %422 = sbr.rel (0) target = $region49
    $region48: #{tpu_custom_call.1} parent=1 // pred_region
      %s424 = ssub.s32 128, 128
      %425 = vsyncadd [#allocation4], %s424
      %s427 = sshll.u32 [#allocation11], 4
      %s428 = int_to_ptr.vmem [resolvable:$true] %s427
      %430 = dma.vmem_to_hbm [thread:$0]  %s428, 128, %s6, [#allocation4]
    $region49: #{tpu_custom_call.1} parent=1 // pred_fallthru
      _
    // Predicated region
    $region50: #{tpu_custom_call.1} parent=1 // pred_check
      _
    $region51: #{tpu_custom_call.1} parent=1 // pred_check_branch
      %432 = sbr.rel (0) target = $region53
    $region52: #{tpu_custom_call.1} parent=1 // pred_region
      %433 = dma.done [#allocation4], 128
    $region53: #{tpu_custom_call.1} parent=1 // pred_fallthru
      _
    %434 = vsyncpa [#allocation3], 1
    %435 = vsyncpa [#allocation6], 1
    %436 = vsyncpa [#allocation9], 1
    %437 = vsyncpa [#allocation4], 1

</llo_original>
